<compile_context>
chip_gen: v7x
topology: tpu7x:2x2x1
jax: 0.10.0
libtpu: 0.0.40
codegen_flags: <defaults>
</compile_context>

<pallas_src>
import functools

import jax
import jax.numpy as jnp
from jax.experimental import pallas as pl
from jax.experimental.pallas import tpu as pltpu


def _round_up(n, m):
    return ((n + m - 1) // m) * m


def cvae_kernel(inp_ref,                  # packed [eps | x | pad], bf16, lane-dense
                wi1_ref, bi1_ref,         # inference net layer 1 (eps rows zero)
                wi2_ref, bi2_ref,         # packed inference head (mu | log_sigma)
                wg1_ref, bg1_ref,         # generator layer 1
                wg2_ref, bg2_ref,         # generator layer 2
                out_ref,                  # packed [head | mu], f32, lane-dense
                *, nz, nz2, matmul_dtype):
    f32 = jnp.float32

    def mm(a, w_ref, b_ref):
        a = a.astype(matmul_dtype)
        w = w_ref[...].astype(matmul_dtype)
        return jnp.dot(a, w, preferred_element_type=f32) + b_ref[...]

    inp = inp_ref[...]                                   # [TB, IN_W]

    # --- inference net q(z|x): whole slab hits wi1 (eps rows are zero) ---
    h = jnp.maximum(mm(inp, wi1_ref, bi1_ref), 0.0)      # [TB, HP]
    head = mm(h, wi2_ref, bi2_ref)                       # [TB, NZ2]: mu@[0:nz], ls@[nz:2nz]

    # --- reparameterized sample (f32 VPU/EUP) ---
    # one XLU roll aligns log_sigma lanes with the mu lanes; eps already sits
    # at lanes [0:nz] of the input slab.
    scale = jnp.exp(pltpu.roll(head, shift=nz2 - nz, axis=1))
    eps = inp[:, :nz2].astype(f32)
    z = head + scale * eps                               # valid in lanes [0:nz]
    lane = jax.lax.broadcasted_iota(jnp.int32, z.shape, 1)
    z = jnp.where(lane < nz, z, 0.0)                     # sanitize padded lanes

    # --- generator p(x|z): Linear -> ReLU -> Linear (wg1 padded rows are zero) ---
    hg = jnp.maximum(mm(z, wg1_ref, bg1_ref), 0.0)       # [TB, HP]
    mu = mm(hg, wg2_ref, bg2_ref)                        # [TB, XP]

    # lane-dense packed output slab, 128-aligned store boundaries (full-lane vst)
    out_ref[:, :nz2] = head
    out_ref[:, nz2:] = mu


def prepare_padded_params(params):
    """Pad/pack the weights once (hoisted out of the per-call path).

    Layout:
      input slab  : [eps @ lanes 0:nz | x @ lanes nz:nz+x_dim | zero pad]
      wi1         : (IN_W, HP), original wi1 at rows [nz : nz+x_dim]
      wi2/bi2     : (HP, NZ2) packed head, mu cols [0:nz], log_sigma cols [nz:2nz]
      wg1         : (NZ2, HP), original wg1 at rows [0:nz]
      wg2/bg2     : (HP, XP)
    """
    f32 = jnp.float32
    x_dim, hidden = params["wi1"].shape
    nz = params["wi2_mu"].shape[1]

    XP = _round_up(x_dim, 128)
    HP = _round_up(hidden, 128)
    NZ2 = _round_up(2 * nz, 128)
    IN_W = max(_round_up(nz + x_dim, 128), NZ2)

    wi1 = jnp.zeros((IN_W, HP), f32).at[nz:nz + x_dim, :hidden].set(params["wi1"])
    bi1 = jnp.zeros((1, HP), f32).at[:, :hidden].set(params["bi1"])
    wi2 = (jnp.zeros((HP, NZ2), f32)
           .at[:hidden, :nz].set(params["wi2_mu"])
           .at[:hidden, nz:2 * nz].set(params["wi2_ls"]))
    bi2 = (jnp.zeros((1, NZ2), f32)
           .at[:, :nz].set(params["bi2_mu"])
           .at[:, nz:2 * nz].set(params["bi2_ls"]))
    wg1 = jnp.zeros((NZ2, HP), f32).at[:nz, :hidden].set(params["wg1"])
    bg1 = jnp.zeros((1, HP), f32).at[:, :hidden].set(params["bg1"])
    wg2 = jnp.zeros((HP, XP), f32).at[:hidden, :x_dim].set(params["wg2"])
    bg2 = jnp.zeros((1, XP), f32).at[:, :x_dim].set(params["bg2"])
    return {"wi1": wi1, "bi1": bi1, "wi2": wi2, "bi2": bi2,
            "wg1": wg1, "bg1": bg1, "wg2": wg2, "bg2": bg2}


def cvae_forward(x, eps, pp, *, tb=None,
                 matmul_dtype=jnp.bfloat16, io_dtype=jnp.bfloat16):
    """Fused CVAE forward. Returns dict mirroring the PyTorch output AttrDict."""
    B, x_dim = x.shape
    nz = eps.shape[1]
    f32 = jnp.float32

    IN_W, HP = pp["wi1"].shape
    NZ2 = pp["wi2"].shape[1]
    XP = pp["wg2"].shape[1]
    out_w = NZ2 + XP

    if tb is None:
        # aim for >=4 grid steps (both v7x TensorCores busy, DMA pipeline warm),
        # multiple of 8 sublanes, capped so double-buffered tiles stay VMEM-safe.
        tb = min(2048, _round_up(pl.cdiv(B, 4), 8))
    B_pad = _round_up(B, tb)

    # single lane-dense packed input slab (bf16 in HBM): one concat + pad.
    inp = jnp.concatenate([eps, x], axis=1)
    inp = jnp.pad(inp, ((0, B_pad - B), (0, IN_W - (nz + x_dim)))).astype(io_dtype)

    kernel = functools.partial(cvae_kernel, nz=nz, nz2=NZ2,
                               matmul_dtype=matmul_dtype)

    def batch_spec(shape):
        return pl.BlockSpec(shape, lambda i: (i, 0))

    def resident(a):
        return pl.BlockSpec(a.shape, lambda i: (0, 0))

    # explicit VMEM budget (v7x only has 64 MiB physical / 32 MiB default scoped)
    weight_bytes = sum(int(a.size) * a.dtype.itemsize for a in pp.values())
    vmem_est = (2 * tb * IN_W * jnp.dtype(io_dtype).itemsize   # dbl-buffered input
                + 2 * tb * out_w * 4                           # dbl-buffered output
                + weight_bytes
                + 8 * tb * max(HP, NZ2, XP) * 4)               # f32 temporaries + slack
    vmem_limit = int(min(max(vmem_est, 32 << 20), 48 << 20))

    out = pl.pallas_call(
        kernel,
        grid=(B_pad // tb,),
        out_shape=jax.ShapeDtypeStruct((B_pad, out_w), f32),
        in_specs=[
            batch_spec((tb, IN_W)),
            resident(pp["wi1"]), resident(pp["bi1"]),
            resident(pp["wi2"]), resident(pp["bi2"]),
            resident(pp["wg1"]), resident(pp["bg1"]),
            resident(pp["wg2"]), resident(pp["bg2"]),
        ],
        out_specs=batch_spec((tb, out_w)),
        compiler_params=pltpu.CompilerParams(
            dimension_semantics=("parallel",),
            vmem_limit_bytes=vmem_limit),
    )(inp, pp["wi1"], pp["bi1"], pp["wi2"], pp["bi2"],
      pp["wg1"], pp["bg1"], pp["wg2"], pp["bg2"])

    # unpack / strip padding in the wrapper
    q_mu = out[:B, :nz]
    q_ls = out[:B, nz:2 * nz]
    mu = out[:B, NZ2:NZ2 + x_dim]
    # z recomputed here from the returned head + the original f32 eps: keeps the
    # kernel's output slab small; identical semantics to q_z.sample().
    z = q_mu + jnp.exp(q_ls) * eps

    # FixedPrior: unit Gaussian of shape [B, nz_vae] (trivial; no kernel needed).
    p_mu = jnp.zeros((B, nz), f32)
    p_ls = jnp.zeros((B, nz), f32)

    return {
        "q_z": {"mu": q_mu, "log_sigma": q_ls},
        "p_z": {"mu": p_mu, "log_sigma": p_ls},
        "z": z,
        "mu": mu,
    }


def init_params(key, x_dim, nz_vae, hidden):
    """Deterministic synthetic parameter init (matching module __init__ shapes)."""
    # TODO(synk): hp.log_sigma / learn_sigma decoder-sigma parameter is not used
    # in forward(), so it is omitted here.
    ks = jax.random.split(key, 6)
    s = 0.05
    wi1 = jax.random.normal(ks[0], (x_dim, hidden), jnp.float32) * s
    bi1 = jnp.zeros((1, hidden), jnp.float32)
    # inference head produces 2*nz_vae channels; split into (mu | log_sigma) halves
    wi2 = jax.random.normal(ks[1], (hidden, 2 * nz_vae), jnp.float32) * s
    bi2 = jax.random.normal(ks[2], (1, 2 * nz_vae), jnp.float32) * s
    wg1 = jax.random.normal(ks[3], (nz_vae, hidden), jnp.float32) * s
    bg1 = jnp.zeros((1, hidden), jnp.float32)
    wg2 = jax.random.normal(ks[4], (hidden, x_dim), jnp.float32) * s
    bg2 = jax.random.normal(ks[5], (1, x_dim), jnp.float32) * s
    return {
        "wi1": wi1, "bi1": bi1,
        "wi2_mu": wi2[:, :nz_vae], "bi2_mu": bi2[:, :nz_vae],
        "wi2_ls": wi2[:, nz_vae:], "bi2_ls": bi2[:, nz_vae:],
        "wg1": wg1, "bg1": bg1,
        "wg2": wg2, "bg2": bg2,
    }


def reference_forward(x, eps, p):
    """Plain-JAX f32 reference for correctness check."""
    h = jnp.maximum(x @ p["wi1"] + p["bi1"], 0.0)
    q_mu = h @ p["wi2_mu"] + p["bi2_mu"]
    q_ls = h @ p["wi2_ls"] + p["bi2_ls"]
    z = q_mu + jnp.exp(q_ls) * eps
    hg = jnp.maximum(z @ p["wg1"] + p["bg1"], 0.0)
    mu = hg @ p["wg2"] + p["bg2"]
    return q_mu, q_ls, z, mu


if __name__ == "__main__":
    B, x_dim, nz_vae, hidden = 16, 32, 16, 32

    key = jax.random.PRNGKey(0)
    kx, keps, kp = jax.random.split(key, 3)
    x = jax.random.normal(kx, (B, x_dim), jnp.float32)
    eps = jax.random.normal(keps, (B, nz_vae), jnp.float32)
    params = init_params(kp, x_dim, nz_vae, hidden)

    # weight padding / head packing hoisted out of the per-call path
    padded = prepare_padded_params(params)

    fwd = jax.jit(cvae_forward)
    out = fwd(x, eps, padded)
    jax.block_until_ready(out)

    # sanity check against the plain-JAX f32 reference (tolerance covers the
    # bf16 MXU operands / bf16 input slab and MXU vs XLA accumulation order)
    q_mu_r, q_ls_r, z_r, mu_r = reference_forward(x, eps, params)
    assert jnp.allclose(out["q_z"]["mu"], q_mu_r, atol=1e-2, rtol=1e-2)
    assert jnp.allclose(out["q_z"]["log_sigma"], q_ls_r, atol=1e-2, rtol=1e-2)
    assert jnp.allclose(out["z"], z_r, atol=1e-2, rtol=1e-2)
    assert jnp.allclose(out["mu"], mu_r, atol=1e-2, rtol=1e-2)

    print("KERNEL_OK")
</pallas_src>

<mosaic_0001>
module attributes {stable_mosaic.version = 11 : i64} {
  func.func @cvae_kernel(%arg0: i32, %arg1: memref<8x128xbf16, #tpu.memory_space<vmem>>, %arg2: memref<128x128xf32, #tpu.memory_space<vmem>>, %arg3: memref<1x128xf32, #tpu.memory_space<vmem>>, %arg4: memref<128x128xf32, #tpu.memory_space<vmem>>, %arg5: memref<1x128xf32, #tpu.memory_space<vmem>>, %arg6: memref<128x128xf32, #tpu.memory_space<vmem>>, %arg7: memref<1x128xf32, #tpu.memory_space<vmem>>, %arg8: memref<128x128xf32, #tpu.memory_space<vmem>>, %arg9: memref<1x128xf32, #tpu.memory_space<vmem>>, %arg10: memref<8x256xf32, #tpu.memory_space<vmem>>) attributes {dimension_semantics = [#tpu.dimension_semantics<parallel>], iteration_bounds = array<i64: 2>, scalar_prefetch = 0 : i64, scratch_operands = 0 : i64, tpu.core_type = #tpu.core_type<tc>, window_params = [{transform_indices = @transform_0, window_bounds = array<i64: 8, 128>}, {pipeline_mode = #tpu.pipeline_mode<synchronous>, transform_indices = @transform_1, window_bounds = array<i64: 128, 128>}, {pipeline_mode = #tpu.pipeline_mode<synchronous>, transform_indices = @transform_2, window_bounds = array<i64: 1, 128>}, {pipeline_mode = #tpu.pipeline_mode<synchronous>, transform_indices = @transform_3, window_bounds = array<i64: 128, 128>}, {pipeline_mode = #tpu.pipeline_mode<synchronous>, transform_indices = @transform_4, window_bounds = array<i64: 1, 128>}, {pipeline_mode = #tpu.pipeline_mode<synchronous>, transform_indices = @transform_5, window_bounds = array<i64: 128, 128>}, {pipeline_mode = #tpu.pipeline_mode<synchronous>, transform_indices = @transform_6, window_bounds = array<i64: 1, 128>}, {pipeline_mode = #tpu.pipeline_mode<synchronous>, transform_indices = @transform_7, window_bounds = array<i64: 128, 128>}, {pipeline_mode = #tpu.pipeline_mode<synchronous>, transform_indices = @transform_8, window_bounds = array<i64: 1, 128>}, {transform_indices = @transform_9, window_bounds = array<i64: 8, 256>}]} {
    %c0 = arith.constant 0 : index
    %c0_0 = arith.constant 0 : index
    %0 = vector.load %arg1[%c0, %c0_0] : memref<8x128xbf16, #tpu.memory_space<vmem>>, vector<8x128xbf16>
    %c0_1 = arith.constant 0 : index
    %c0_2 = arith.constant 0 : index
    %1 = vector.load %arg2[%c0_1, %c0_2] : memref<128x128xf32, #tpu.memory_space<vmem>>, vector<128x128xf32>
    %2 = arith.truncf %1 : vector<128x128xf32> to vector<128x128xbf16>
    %cst = arith.constant dense<0.000000e+00> : vector<8x128xf32>
    %3 = tpu.matmul %0, %2, %cst {dimension_numbers = #tpu.dot_dimension_numbers<[1], [0], [0], [1], [0, 0, 1, 1], [], []>} : vector<8x128xbf16>, vector<128x128xbf16>, vector<8x128xf32> -> vector<8x128xf32>
    %c0_3 = arith.constant 0 : index
    %c0_4 = arith.constant 0 : index
    %4 = vector.load %arg3[%c0_3, %c0_4] : memref<1x128xf32, #tpu.memory_space<vmem>>, vector<1x128xf32>
    %5 = vector.broadcast %4 : vector<1x128xf32> to vector<8x128xf32>
    %6 = arith.addf %3, %5 : vector<8x128xf32>
    %cst_5 = arith.constant 0.000000e+00 : f32
    %7 = vector.broadcast %cst_5 : f32 to vector<8x128xf32>
    %8 = arith.maximumf %6, %7 : vector<8x128xf32>
    %9 = arith.truncf %8 : vector<8x128xf32> to vector<8x128xbf16>
    %c0_6 = arith.constant 0 : index
    %c0_7 = arith.constant 0 : index
    %10 = vector.load %arg4[%c0_6, %c0_7] : memref<128x128xf32, #tpu.memory_space<vmem>>, vector<128x128xf32>
    %11 = arith.truncf %10 : vector<128x128xf32> to vector<128x128xbf16>
    %cst_8 = arith.constant dense<0.000000e+00> : vector<8x128xf32>
    %12 = tpu.matmul %9, %11, %cst_8 {dimension_numbers = #tpu.dot_dimension_numbers<[1], [0], [0], [1], [0, 0, 1, 1], [], []>} : vector<8x128xbf16>, vector<128x128xbf16>, vector<8x128xf32> -> vector<8x128xf32>
    %c0_9 = arith.constant 0 : index
    %c0_10 = arith.constant 0 : index
    %13 = vector.load %arg5[%c0_9, %c0_10] : memref<1x128xf32, #tpu.memory_space<vmem>>, vector<1x128xf32>
    %14 = vector.broadcast %13 : vector<1x128xf32> to vector<8x128xf32>
    %15 = arith.addf %12, %14 : vector<8x128xf32>
    %c112_i32 = arith.constant 112 : i32
    %16 = tpu.dynamic_rotate %15 by %c112_i32 dim 1 : vector<8x128xf32>, i32 -> vector<8x128xf32>
    %17 = math.exp %16 : vector<8x128xf32>
    %18 = arith.extf %0 : vector<8x128xbf16> to vector<8x128xf32>
    %19 = arith.mulf %17, %18 : vector<8x128xf32>
    %20 = arith.addf %15, %19 : vector<8x128xf32>
    %21 = tpu.iota {dimensions = array<i32: 1>} : vector<8x128xi32>
    %c16_i32 = arith.constant 16 : i32
    %22 = vector.broadcast %c16_i32 : i32 to vector<8x128xi32>
    %23 = arith.cmpi slt, %21, %22 : vector<8x128xi32>
    %cst_11 = arith.constant 0.000000e+00 : f32
    %24 = vector.broadcast %cst_11 : f32 to vector<8x128xf32>
    %25 = arith.select %23, %20, %24 : vector<8x128xi1>, vector<8x128xf32>
    %26 = arith.truncf %25 : vector<8x128xf32> to vector<8x128xbf16>
    %c0_12 = arith.constant 0 : index
    %c0_13 = arith.constant 0 : index
    %27 = vector.load %arg6[%c0_12, %c0_13] : memref<128x128xf32, #tpu.memory_space<vmem>>, vector<128x128xf32>
    %28 = arith.truncf %27 : vector<128x128xf32> to vector<128x128xbf16>
    %cst_14 = arith.constant dense<0.000000e+00> : vector<8x128xf32>
    %29 = tpu.matmul %26, %28, %cst_14 {dimension_numbers = #tpu.dot_dimension_numbers<[1], [0], [0], [1], [0, 0, 1, 1], [], []>} : vector<8x128xbf16>, vector<128x128xbf16>, vector<8x128xf32> -> vector<8x128xf32>
    %c0_15 = arith.constant 0 : index
    %c0_16 = arith.constant 0 : index
    %30 = vector.load %arg7[%c0_15, %c0_16] : memref<1x128xf32, #tpu.memory_space<vmem>>, vector<1x128xf32>
    %31 = vector.broadcast %30 : vector<1x128xf32> to vector<8x128xf32>
    %32 = arith.addf %29, %31 : vector<8x128xf32>
    %cst_17 = arith.constant 0.000000e+00 : f32
    %33 = vector.broadcast %cst_17 : f32 to vector<8x128xf32>
    %34 = arith.maximumf %32, %33 : vector<8x128xf32>
    %35 = arith.truncf %34 : vector<8x128xf32> to vector<8x128xbf16>
    %c0_18 = arith.constant 0 : index
    %c0_19 = arith.constant 0 : index
    %36 = vector.load %arg8[%c0_18, %c0_19] : memref<128x128xf32, #tpu.memory_space<vmem>>, vector<128x128xf32>
    %37 = arith.truncf %36 : vector<128x128xf32> to vector<128x128xbf16>
    %cst_20 = arith.constant dense<0.000000e+00> : vector<8x128xf32>
    %38 = tpu.matmul %35, %37, %cst_20 {dimension_numbers = #tpu.dot_dimension_numbers<[1], [0], [0], [1], [0, 0, 1, 1], [], []>} : vector<8x128xbf16>, vector<128x128xbf16>, vector<8x128xf32> -> vector<8x128xf32>
    %c0_21 = arith.constant 0 : index
    %c0_22 = arith.constant 0 : index
    %39 = vector.load %arg9[%c0_21, %c0_22] : memref<1x128xf32, #tpu.memory_space<vmem>>, vector<1x128xf32>
    %40 = vector.broadcast %39 : vector<1x128xf32> to vector<8x128xf32>
    %41 = arith.addf %38, %40 : vector<8x128xf32>
    %c0_23 = arith.constant 0 : index
    %c0_24 = arith.constant 0 : index
    %42 = vector.load %arg10[%c0_23, %c0_24] : memref<8x256xf32, #tpu.memory_space<vmem>>, vector<8x128xf32>
    tpu.vector_store %arg10[%c0_23, %c0_24], %15 {strides = array<i32>} : memref<8x256xf32, #tpu.memory_space<vmem>>, vector<8x128xf32>,
    %c0_25 = arith.constant 0 : index
    %c128 = arith.constant 128 : index
    %43 = vector.load %arg10[%c0_25, %c128] : memref<8x256xf32, #tpu.memory_space<vmem>>, vector<8x128xf32>
    tpu.vector_store %arg10[%c0_25, %c128], %41 {strides = array<i32>} : memref<8x256xf32, #tpu.memory_space<vmem>>, vector<8x128xf32>,
    return
  }
  func.func @transform_0(%arg0: i32) -> (i32, i32) {
    %c0_i32 = arith.constant 0 : i32
    %c0_i32_0 = arith.constant 0 : i32
    return %arg0, %c0_i32 : i32, i32
  }
  func.func @transform_1(%arg0: i32) -> (i32, i32) {
    %c0_i32 = arith.constant 0 : i32
    %c0_i32_0 = arith.constant 0 : i32
    %c0_i32_1 = arith.constant 0 : i32
    return %c0_i32, %c0_i32_0 : i32, i32
  }
  func.func @transform_2(%arg0: i32) -> (i32, i32) {
    %c0_i32 = arith.constant 0 : i32
    %c0_i32_0 = arith.constant 0 : i32
    %c0_i32_1 = arith.constant 0 : i32
    return %c0_i32, %c0_i32_0 : i32, i32
  }
  func.func @transform_3(%arg0: i32) -> (i32, i32) {
    %c0_i32 = arith.constant 0 : i32
    %c0_i32_0 = arith.constant 0 : i32
    %c0_i32_1 = arith.constant 0 : i32
    return %c0_i32, %c0_i32_0 : i32, i32
  }
  func.func @transform_4(%arg0: i32) -> (i32, i32) {
    %c0_i32 = arith.constant 0 : i32
    %c0_i32_0 = arith.constant 0 : i32
    %c0_i32_1 = arith.constant 0 : i32
    return %c0_i32, %c0_i32_0 : i32, i32
  }
  func.func @transform_5(%arg0: i32) -> (i32, i32) {
    %c0_i32 = arith.constant 0 : i32
    %c0_i32_0 = arith.constant 0 : i32
    %c0_i32_1 = arith.constant 0 : i32
    return %c0_i32, %c0_i32_0 : i32, i32
  }
  func.func @transform_6(%arg0: i32) -> (i32, i32) {
    %c0_i32 = arith.constant 0 : i32
    %c0_i32_0 = arith.constant 0 : i32
    %c0_i32_1 = arith.constant 0 : i32
    return %c0_i32, %c0_i32_0 : i32, i32
  }
  func.func @transform_7(%arg0: i32) -> (i32, i32) {
    %c0_i32 = arith.constant 0 : i32
    %c0_i32_0 = arith.constant 0 : i32
    %c0_i32_1 = arith.constant 0 : i32
    return %c0_i32, %c0_i32_0 : i32, i32
  }
  func.func @transform_8(%arg0: i32) -> (i32, i32) {
    %c0_i32 = arith.constant 0 : i32
    %c0_i32_0 = arith.constant 0 : i32
    %c0_i32_1 = arith.constant 0 : i32
    return %c0_i32, %c0_i32_0 : i32, i32
  }
  func.func @transform_9(%arg0: i32) -> (i32, i32) {
    %c0_i32 = arith.constant 0 : i32
    %c0_i32_0 = arith.constant 0 : i32
    return %arg0, %c0_i32 : i32, i32
  }
}

</mosaic_0001>

<llo_original>
// kernel: cvae_forward.1
$region0: #{cvae_forward.1}
  #allocation0 [shape = 'u32[]', space=smem, size = 0x4, offset = 0x4, fixed_abs, tag = 'smem constant byte address 0x4 - core index']
  #allocation1 [shape = 'u32[144,128]{1,0:T(1,128)}', space=vmem, size = 0x12000, scoped, tag = 'internal scratch']
  %s0 = inlined_call_operand.vmem [shape: bf16[16,128], index: 0, kind: input, shape index: {}]
  %s1 = inlined_call_operand.hbm [shape: f32[128,128], index: 1, kind: input, shape index: {}]
  %s2 = inlined_call_operand.vmem [shape: f32[1,128], index: 2, kind: input, shape index: {}]
  %s3 = inlined_call_operand.hbm [shape: f32[128,128], index: 3, kind: input, shape index: {}]
  %s4 = inlined_call_operand.vmem [shape: f32[1,128], index: 4, kind: input, shape index: {}]
  %s5 = inlined_call_operand.hbm [shape: f32[128,128], index: 5, kind: input, shape index: {}]
  %s6 = inlined_call_operand.vmem [shape: f32[1,128], index: 6, kind: input, shape index: {}]
  %s7 = inlined_call_operand.hbm [shape: f32[128,128], index: 7, kind: input, shape index: {}]
  %s8 = inlined_call_operand.vmem [shape: f32[1,128], index: 8, kind: input, shape index: {}]
  %s9 = inlined_call_operand.vmem [shape: f32[16,256], index: 9, kind: output, shape index: {}]
  %s10 = sld [smem:[#allocation0]]
  $region85: #{cvae_forward.1} parent=0
    _
  %s12 = ssub.s32 1, %s10
  %s13 = scalar_select 0, %s12, %s10
  $region1: #{cvae_forward.1} parent=0
    #allocation2 [shape = 'u8[65536]{0}', space=vmem, size = 0x10000, scoped, tag = 'input window, operand 1, single buffered']
    #allocation3 [shape = 's32[2]{0}', space=sflag, size = 0x8, scoped, tag = 'scoped memory for cvae_forward.1']
    #allocation4 [shape = 'u8[65536]{0}', space=vmem, size = 0x10000, scoped, tag = 'input window, operand 3, single buffered']
    #allocation5 [shape = 's32[1]{0}', space=sflag, size = 0x4, scoped, tag = 'scoped memory for cvae_forward.1']
    #allocation6 [shape = 'u8[65536]{0}', space=vmem, size = 0x10000, scoped, tag = 'input window, operand 5, single buffered']
    #allocation7 [shape = 'u8[65536]{0}', space=vmem, size = 0x10000, scoped, tag = 'input window, operand 7, single buffered']
    #allocation8 [shape = 's32[1]{0}', space=sflag, size = 0x4, scoped, tag = 'scoped memory for cvae_forward.1']
    %14 = vsyncpa [#allocation3], 0
    %15 = vsyncpa [#allocation5], 0
    %16 = vsyncpa [#allocation8], 0
    loop: start=0, step=1, limit=4
    $region2: #{cvae_forward.1} parent=1 // loop_pre_header
      _
    $region3: #{cvae_forward.1} parent=1 // loop_header
      %s18 = sphi 0, %s22
      %p19 = scmp.ge.s32.totalorder %s18, 4
      %s28 = sphi 0, %s30
      %s31 = sphi 0, %s28
      %s32 = sphi 0, %s31
      %s48 = sphi 0, %s32
      %s52 = sphi 0, %s52
      %s54 = sphi 0, %s52
      %s55 = sphi 0, %s54
      %s69 = sphi 0, %s55
      %s73 = sphi 0, %s73
      %s75 = sphi 0, %s73
      %s76 = sphi 0, %s75
      %s90 = sphi 0, %s76
      %s94 = sphi 0, %s94
      %s96 = sphi 0, %s94
      %s97 = sphi 0, %s96
      %s111 = sphi 0, %s97
      %s115 = sphi 0, %s115
      %s117 = sphi 0, %s115
      %s118 = sphi 0, %s117
      %s132 = sphi 0, %s118
      %s136 = sphi 0, %s136
      %s138 = sphi 0, %s136
      %s139 = sphi 0, %s138
      %s153 = sphi 0, %s139
      %s157 = sphi 0, %s157
      %s159 = sphi 0, %s157
      %s160 = sphi 0, %s159
      %s174 = sphi 0, %s160
      %s178 = sphi 0, %s178
      %s180 = sphi 0, %s178
      %s181 = sphi 0, %s180
      %s195 = sphi 0, %s181
      %s199 = sphi 0, %s199
      %s201 = sphi 0, %s199
      %s202 = sphi 0, %s201
      %s216 = sphi 0, %s202
      %s222 = sphi 0, %s224
      %s225 = sphi 0, %s222
      %s226 = sphi 0, %s225
      %s242 = sphi 0, %s226
    $region4: #{cvae_forward.1} parent=1 // loop_header_branch
      %21 = sbr.rel (%p19) target = $region8
    $region5: #{cvae_forward.1} parent=1 // loop_body
      %s23 = ssub.s32 %s18, 1
      %s24 = ssub.s32 %s18, 2
      %s25 = sadd.s32 %s18, 1
      %s26 = ssub.s32 %s18, %s25
      %p27 = scmp.eq.s32.totalorder %s26, 0
      %s29 = sadd.s32 %s28, 1
      %s30 = scalar_select %p27, %s28, %s29
      %p33 = pneg %p27
      %p34 = scmp.eq.s32.totalorder %s18, 1
      %p35 = por %p33, %p34
      %p36 = scmp.ne.s32.totalorder %s28, %s31
      %p37 = scmp.eq.s32.totalorder %s18, 0
      %p38 = por %p36, %p37
      %p39 = scmp.ne.s32.totalorder %s28, %s31
      %p40 = scmp.eq.s32.totalorder %s23, 1
      %p41 = por %p39, %p40
      %p42 = scmp.ne.s32.totalorder %s31, %s32
      %p43 = scmp.eq.s32.totalorder %s23, 0
      %p44 = por %p42, %p43
      %p45 = scmp.ne.s32.totalorder %s31, %s32
      %p46 = scmp.eq.s32.totalorder %s24, 1
      %p47 = por %p45, %p46
      %p49 = scmp.ne.s32.totalorder %s32, %s48
      %p50 = scmp.eq.s32.totalorder %s24, 0
      %p51 = por %p49, %p50
      %s53 = sadd.s32 %s52, 1
      %p56 = scmp.eq.s32.totalorder %s18, 1
      %p57 = scmp.ne.s32.totalorder %s52, %s54
      %p58 = scmp.eq.s32.totalorder %s18, 0
      %p59 = por %p57, %p58
      %p60 = scmp.ne.s32.totalorder %s52, %s54
      %p61 = scmp.eq.s32.totalorder %s23, 1
      %p62 = por %p60, %p61
      %p63 = scmp.ne.s32.totalorder %s54, %s55
      %p64 = scmp.eq.s32.totalorder %s23, 0
      %p65 = por %p63, %p64
      %p66 = scmp.ne.s32.totalorder %s54, %s55
      %p67 = scmp.eq.s32.totalorder %s24, 1
      %p68 = por %p66, %p67
      %p70 = scmp.ne.s32.totalorder %s55, %s69
      %p71 = scmp.eq.s32.totalorder %s24, 0
      %p72 = por %p70, %p71
      %s74 = sadd.s32 %s73, 1
      %p77 = scmp.eq.s32.totalorder %s18, 1
      %p78 = scmp.ne.s32.totalorder %s73, %s75
      %p79 = scmp.eq.s32.totalorder %s18, 0
      %p80 = por %p78, %p79
      %p81 = scmp.ne.s32.totalorder %s73, %s75
      %p82 = scmp.eq.s32.totalorder %s23, 1
      %p83 = por %p81, %p82
      %p84 = scmp.ne.s32.totalorder %s75, %s76
      %p85 = scmp.eq.s32.totalorder %s23, 0
      %p86 = por %p84, %p85
      %p87 = scmp.ne.s32.totalorder %s75, %s76
      %p88 = scmp.eq.s32.totalorder %s24, 1
      %p89 = por %p87, %p88
      %p91 = scmp.ne.s32.totalorder %s76, %s90
      %p92 = scmp.eq.s32.totalorder %s24, 0
      %p93 = por %p91, %p92
      %s95 = sadd.s32 %s94, 1
      %p98 = scmp.eq.s32.totalorder %s18, 1
      %p99 = scmp.ne.s32.totalorder %s94, %s96
      %p100 = scmp.eq.s32.totalorder %s18, 0
      %p101 = por %p99, %p100
      %p102 = scmp.ne.s32.totalorder %s94, %s96
      %p103 = scmp.eq.s32.totalorder %s23, 1
      %p104 = por %p102, %p103
      %p105 = scmp.ne.s32.totalorder %s96, %s97
      %p106 = scmp.eq.s32.totalorder %s23, 0
      %p107 = por %p105, %p106
      %p108 = scmp.ne.s32.totalorder %s96, %s97
      %p109 = scmp.eq.s32.totalorder %s24, 1
      %p110 = por %p108, %p109
      %p112 = scmp.ne.s32.totalorder %s97, %s111
      %p113 = scmp.eq.s32.totalorder %s24, 0
      %p114 = por %p112, %p113
      %s116 = sadd.s32 %s115, 1
      %p119 = scmp.eq.s32.totalorder %s18, 1
      %p120 = scmp.ne.s32.totalorder %s115, %s117
      %p121 = scmp.eq.s32.totalorder %s18, 0
      %p122 = por %p120, %p121
      %p123 = scmp.ne.s32.totalorder %s115, %s117
      %p124 = scmp.eq.s32.totalorder %s23, 1
      %p125 = por %p123, %p124
      %p126 = scmp.ne.s32.totalorder %s117, %s118
      %p127 = scmp.eq.s32.totalorder %s23, 0
      %p128 = por %p126, %p127
      %p129 = scmp.ne.s32.totalorder %s117, %s118
      %p130 = scmp.eq.s32.totalorder %s24, 1
      %p131 = por %p129, %p130
      %p133 = scmp.ne.s32.totalorder %s118, %s132
      %p134 = scmp.eq.s32.totalorder %s24, 0
      %p135 = por %p133, %p134
      %s137 = sadd.s32 %s136, 1
      %p140 = scmp.eq.s32.totalorder %s18, 1
      %p141 = scmp.ne.s32.totalorder %s136, %s138
      %p142 = scmp.eq.s32.totalorder %s18, 0
      %p143 = por %p141, %p142
      %p144 = scmp.ne.s32.totalorder %s136, %s138
      %p145 = scmp.eq.s32.totalorder %s23, 1
      %p146 = por %p144, %p145
      %p147 = scmp.ne.s32.totalorder %s138, %s139
      %p148 = scmp.eq.s32.totalorder %s23, 0
      %p149 = por %p147, %p148
      %p150 = scmp.ne.s32.totalorder %s138, %s139
      %p151 = scmp.eq.s32.totalorder %s24, 1
      %p152 = por %p150, %p151
      %p154 = scmp.ne.s32.totalorder %s139, %s153
      %p155 = scmp.eq.s32.totalorder %s24, 0
      %p156 = por %p154, %p155
      %s158 = sadd.s32 %s157, 1
      %p161 = scmp.eq.s32.totalorder %s18, 1
      %p162 = scmp.ne.s32.totalorder %s157, %s159
      %p163 = scmp.eq.s32.totalorder %s18, 0
      %p164 = por %p162, %p163
      %p165 = scmp.ne.s32.totalorder %s157, %s159
      %p166 = scmp.eq.s32.totalorder %s23, 1
      %p167 = por %p165, %p166
      %p168 = scmp.ne.s32.totalorder %s159, %s160
      %p169 = scmp.eq.s32.totalorder %s23, 0
      %p170 = por %p168, %p169
      %p171 = scmp.ne.s32.totalorder %s159, %s160
      %p172 = scmp.eq.s32.totalorder %s24, 1
      %p173 = por %p171, %p172
      %p175 = scmp.ne.s32.totalorder %s160, %s174
      %p176 = scmp.eq.s32.totalorder %s24, 0
      %p177 = por %p175, %p176
      %s179 = sadd.s32 %s178, 1
      %p182 = scmp.eq.s32.totalorder %s18, 1
      %p183 = scmp.ne.s32.totalorder %s178, %s180
      %p184 = scmp.eq.s32.totalorder %s18, 0
      %p185 = por %p183, %p184
      %p186 = scmp.ne.s32.totalorder %s178, %s180
      %p187 = scmp.eq.s32.totalorder %s23, 1
      %p188 = por %p186, %p187
      %p189 = scmp.ne.s32.totalorder %s180, %s181
      %p190 = scmp.eq.s32.totalorder %s23, 0
      %p191 = por %p189, %p190
      %p192 = scmp.ne.s32.totalorder %s180, %s181
      %p193 = scmp.eq.s32.totalorder %s24, 1
      %p194 = por %p192, %p193
      %p196 = scmp.ne.s32.totalorder %s181, %s195
      %p197 = scmp.eq.s32.totalorder %s24, 0
      %p198 = por %p196, %p197
      %s200 = sadd.s32 %s199, 1
      %p203 = scmp.eq.s32.totalorder %s18, 1
      %p204 = scmp.ne.s32.totalorder %s199, %s201
      %p205 = scmp.eq.s32.totalorder %s18, 0
      %p206 = por %p204, %p205
      %p207 = scmp.ne.s32.totalorder %s199, %s201
      %p208 = scmp.eq.s32.totalorder %s23, 1
      %p209 = por %p207, %p208
      %p210 = scmp.ne.s32.totalorder %s201, %s202
      %p211 = scmp.eq.s32.totalorder %s23, 0
      %p212 = por %p210, %p211
      %p213 = scmp.ne.s32.totalorder %s201, %s202
      %p214 = scmp.eq.s32.totalorder %s24, 1
      %p215 = por %p213, %p214
      %p217 = scmp.ne.s32.totalorder %s202, %s216
      %p218 = scmp.eq.s32.totalorder %s24, 0
      %p219 = por %p217, %p218
      %s220 = ssub.s32 %s18, %s25
      %p221 = scmp.eq.s32.totalorder %s220, 0
      %s223 = sadd.s32 %s222, 1
      %s224 = scalar_select %p221, %s222, %s223
      %p227 = pneg %p221
      %p228 = scmp.eq.s32.totalorder %s18, 1
      %p229 = por %p227, %p228
      %p230 = scmp.ne.s32.totalorder %s222, %s225
      %p231 = scmp.eq.s32.totalorder %s18, 0
      %p232 = por %p230, %p231
      %p233 = scmp.ne.s32.totalorder %s222, %s225
      %p234 = scmp.eq.s32.totalorder %s23, 1
      %p235 = por %p233, %p234
      %p236 = scmp.ne.s32.totalorder %s225, %s226
      %p237 = scmp.eq.s32.totalorder %s23, 0
      %p238 = por %p236, %p237
      %p239 = scmp.ne.s32.totalorder %s225, %s226
      %p240 = scmp.eq.s32.totalorder %s24, 1
      %p241 = por %p239, %p240
      %p243 = scmp.ne.s32.totalorder %s226, %s242
      %p244 = scmp.eq.s32.totalorder %s24, 0
      %p245 = por %p243, %p244
      %p246 = scmp.le.s32.totalorder 1, %s18
      %p247 = scmp.lt.s32.totalorder %s18, 3
      %p248 = pnand %p246, %p247
      %p249 = pneg %p248
      // Predicated region
      $region9: #{cvae_forward.1} parent=5 // pred_check
        _
      $region10: #{cvae_forward.1} parent=5 // pred_check_branch
        %251 = sbr.rel (%p248) target = $region12
      $region11: #{cvae_forward.1} parent=5 // pred_region
        %s252 = ssub.s32 %s18, 1
        // Predicated region
        $region13: #{cvae_forward.1} parent=11 // pred_check
          %p253 = pneg %p65
        $region14: #{cvae_forward.1} parent=11 // pred_check_branch
          %255 = sbr.rel (%p253) target = $region16
        $region15: #{cvae_forward.1} parent=11 // pred_region
          %s257 = ssub.s32 2048, 2048
          %258 = vsyncadd [#allocation3], %s257
          %s259 = sshll.u32 [#allocation2], 4
          %s260 = int_to_ptr.vmem [resolvable:$true] %s259
          %265 = dma.hbm_to_vmem [thread:$0]  %s1, 2048, %s260, [#allocation3], 128, 128, 8
        $region16: #{cvae_forward.1} parent=11 // pred_fallthru
          _
        // Predicated region
        $region17: #{cvae_forward.1} parent=11 // pred_check
          %p266 = pneg %p86
        $region18: #{cvae_forward.1} parent=11 // pred_check_branch
          %268 = sbr.rel (%p266) target = $region20
        $region19: #{cvae_forward.1} parent=11 // pred_region
          _
        $region20: #{cvae_forward.1} parent=11 // pred_fallthru
          _
        // Predicated region
        $region21: #{cvae_forward.1} parent=11 // pred_check
          %p269 = pneg %p107
        $region22: #{cvae_forward.1} parent=11 // pred_check_branch
          %271 = sbr.rel (%p269) target = $region24
        $region23: #{cvae_forward.1} parent=11 // pred_region
          %s273 = ssub.s32 2048, 2048
          %274 = vsyncadd [#allocation5], %s273
          %s275 = sshll.u32 [#allocation4], 4
          %s276 = int_to_ptr.vmem [resolvable:$true] %s275
          %281 = dma.hbm_to_vmem [thread:$0]  %s3, 2048, %s276, [#allocation5], 128, 128, 8
        $region24: #{cvae_forward.1} parent=11 // pred_fallthru
          _
        // Predicated region
        $region25: #{cvae_forward.1} parent=11 // pred_check
          %p282 = pneg %p128
        $region26: #{cvae_forward.1} parent=11 // pred_check_branch
          %284 = sbr.rel (%p282) target = $region28
        $region27: #{cvae_forward.1} parent=11 // pred_region
          _
        $region28: #{cvae_forward.1} parent=11 // pred_fallthru
          _
        // Predicated region
        $region29: #{cvae_forward.1} parent=11 // pred_check
          %p285 = pneg %p149
        $region30: #{cvae_forward.1} parent=11 // pred_check_branch
          %287 = sbr.rel (%p285) target = $region32
        $region31: #{cvae_forward.1} parent=11 // pred_region
          %s289 = ssub.s32 2048, 2048
          %290 = vsyncadd [#allocation5], %s289
          %s291 = sshll.u32 [#allocation6], 4
          %s292 = int_to_ptr.vmem [resolvable:$true] %s291
          %297 = dma.hbm_to_vmem [thread:$0]  %s5, 2048, %s292, [#allocation5], 128, 128, 8
        $region32: #{cvae_forward.1} parent=11 // pred_fallthru
          _
        // Predicated region
        $region33: #{cvae_forward.1} parent=11 // pred_check
          %p298 = pneg %p170
        $region34: #{cvae_forward.1} parent=11 // pred_check_branch
          %300 = sbr.rel (%p298) target = $region36
        $region35: #{cvae_forward.1} parent=11 // pred_region
          _
        $region36: #{cvae_forward.1} parent=11 // pred_fallthru
          _
        // Predicated region
        $region37: #{cvae_forward.1} parent=11 // pred_check
          %p301 = pneg %p191
        $region38: #{cvae_forward.1} parent=11 // pred_check_branch
          %303 = sbr.rel (%p301) target = $region40
        $region39: #{cvae_forward.1} parent=11 // pred_region
          %s305 = ssub.s32 2048, 2048
          %306 = vsyncadd [#allocation8], %s305
          %s307 = sshll.u32 [#allocation7], 4
          %s308 = int_to_ptr.vmem [resolvable:$true] %s307
          %313 = dma.hbm_to_vmem [thread:$0]  %s7, 2048, %s308, [#allocation8], 128, 128, 8
        $region40: #{cvae_forward.1} parent=11 // pred_fallthru
          _
        // Predicated region
        $region41: #{cvae_forward.1} parent=11 // pred_check
          %p314 = pneg %p212
        $region42: #{cvae_forward.1} parent=11 // pred_check_branch
          %316 = sbr.rel (%p314) target = $region44
        $region43: #{cvae_forward.1} parent=11 // pred_region
          _
        $region44: #{cvae_forward.1} parent=11 // pred_fallthru
          _
      $region12: #{cvae_forward.1} parent=5 // pred_fallthru
        _
      %p317 = scmp.lt.s32.totalorder %s18, 2
      // Predicated region
      $region45: #{cvae_forward.1} parent=5 // pred_check
        %p318 = pneg %p317
      $region46: #{cvae_forward.1} parent=5 // pred_check_branch
        %320 = sbr.rel (%p318) target = $region48
      $region47: #{cvae_forward.1} parent=5 // pred_region
        // Predicated region
        $region49: #{cvae_forward.1} parent=47 // pred_check
          %p321 = pneg %p38
        $region50: #{cvae_forward.1} parent=47 // pred_check_branch
          %323 = sbr.rel (%p321) target = $region52
        $region51: #{cvae_forward.1} parent=47 // pred_region
          %p324 = scmp.lt.s32.totalorder %s18, 1
          %s325 = scalar_select %p324, %s18, 1
          %s326 = smul.addr %s325, 4
          %s327 = scalar_lea.vmem %s0, %s326
        $region52: #{cvae_forward.1} parent=47 // pred_fallthru
          _
      $region48: #{cvae_forward.1} parent=5 // pred_fallthru
        _
      %p328 = scmp.le.s32.totalorder 1, %s18
      %p329 = scmp.lt.s32.totalorder %s18, 3
      %p330 = pnand %p328, %p329
      %p331 = pneg %p330
      // Predicated region
      $region53: #{cvae_forward.1} parent=5 // pred_check
        _
      $region54: #{cvae_forward.1} parent=5 // pred_check_branch
        %333 = sbr.rel (%p330) target = $region56
      $region55: #{cvae_forward.1} parent=5 // pred_region
        %s334 = ssub.s32 %s18, 1
        // Predicated region
        $region57: #{cvae_forward.1} parent=55 // pred_check
          %p335 = pneg %p65
        $region58: #{cvae_forward.1} parent=55 // pred_check_branch
          %337 = sbr.rel (%p335) target = $region60
        $region59: #{cvae_forward.1} parent=55 // pred_region
          %338 = dma.done [#allocation3], 2048
        $region60: #{cvae_forward.1} parent=55 // pred_fallthru
          _
        // Predicated region
        $region61: #{cvae_forward.1} parent=55 // pred_check
          %p339 = pneg %p107
        $region62: #{cvae_forward.1} parent=55 // pred_check_branch
          %341 = sbr.rel (%p339) target = $region64
        $region63: #{cvae_forward.1} parent=55 // pred_region
          %342 = dma.done [#allocation5], 2048
        $region64: #{cvae_forward.1} parent=55 // pred_fallthru
          _
        // Predicated region
        $region65: #{cvae_forward.1} parent=55 // pred_check
          %p343 = pneg %p149
        $region66: #{cvae_forward.1} parent=55 // pred_check_branch
          %345 = sbr.rel (%p343) target = $region68
        $region67: #{cvae_forward.1} parent=55 // pred_region
          %346 = dma.done [#allocation5], 2048
        $region68: #{cvae_forward.1} parent=55 // pred_fallthru
          _
        // Predicated region
        $region69: #{cvae_forward.1} parent=55 // pred_check
          %p347 = pneg %p191
        $region70: #{cvae_forward.1} parent=55 // pred_check_branch
          %349 = sbr.rel (%p347) target = $region72
        $region71: #{cvae_forward.1} parent=55 // pred_region
          %350 = dma.done [#allocation8], 2048
        $region72: #{cvae_forward.1} parent=55 // pred_fallthru
          _
        %p351 = scmp.lt.s32.totalorder %s23, 1
        %s352 = scalar_select %p351, %s23, 1
        %s353 = smul.addr %s352, 4
        %s354 = scalar_lea.vmem %s0, %s353
        %p355 = pneg %p44
        %p356 = pneg %p41
        %p357 = pneg %p65
        %p358 = pneg %p62
        %p359 = pneg %p86
        %p360 = pneg %p83
        %p361 = pneg %p107
        %p362 = pneg %p104
        %p363 = pneg %p128
        %p364 = pneg %p125
        %p365 = pneg %p149
        %p366 = pneg %p146
        %p367 = pneg %p170
        %p368 = pneg %p167
        %p369 = pneg %p191
        %p370 = pneg %p188
        %p371 = pneg %p212
        %p372 = pneg %p209
        %p373 = pneg %p238
        %p374 = pneg %p235
        %p375 = scmp.lt.s32.totalorder %s23, 1
        %s376 = scalar_select %p375, %s23, 1
        %s377 = smul.addr %s376, 2
        %s378 = smul.addr %s377, 8
        %s379 = scalar_lea.vmem %s9, %s378
        %p380 = scmp.lt.s32.totalorder %s23, 1
        %s381 = scalar_select %p380, %s23, 1
        %s382 = smul.addr %s381, 4
        %s383 = scalar_lea.vmem %s0, %s382
        %p384 = scmp.lt.s32.totalorder %s23, 1
        %s385 = scalar_select %p384, %s23, 1
        %s386 = smul.addr %s385, 2
        %s387 = smul.addr %s386, 8
        %s388 = scalar_lea.vmem %s9, %s387
        %v390 = vld [vmem:[%s383] sm:$0xf]
        %v391 = vld [vmem:[#allocation2] sm:$0xff]
        %v392 = vld [vmem:[#allocation2 + $0x8] sm:$0xff]
        %v393 = vld [vmem:[#allocation2 + $0x10] sm:$0xff]
        %v394 = vld [vmem:[#allocation2 + $0x18] sm:$0xff]
        %v395 = vld [vmem:[#allocation2 + $0x20] sm:$0xff]
        %v396 = vld [vmem:[#allocation2 + $0x28] sm:$0xff]
        %v397 = vld [vmem:[#allocation2 + $0x30] sm:$0xff]
        %v398 = vld [vmem:[#allocation2 + $0x38] sm:$0xff]
        %v399 = vld [vmem:[#allocation2 + $0x40] sm:$0xff]
        %v400 = vld [vmem:[#allocation2 + $0x48] sm:$0xff]
        %v401 = vld [vmem:[#allocation2 + $0x50] sm:$0xff]
        %v402 = vld [vmem:[#allocation2 + $0x58] sm:$0xff]
        %v403 = vld [vmem:[#allocation2 + $0x60] sm:$0xff]
        %v404 = vld [vmem:[#allocation2 + $0x68] sm:$0xff]
        %v405 = vld [vmem:[#allocation2 + $0x70] sm:$0xff]
        %v406 = vld [vmem:[#allocation2 + $0x78] sm:$0xff]
        %v407 = vpack.c.bf16 %v392, %v391
        %v408 = vpack.c.bf16 %v394, %v393
        %v409 = vpack.c.bf16 %v396, %v395
        %v410 = vpack.c.bf16 %v398, %v397
        %v411 = vpack.c.bf16 %v400, %v399
        %v412 = vpack.c.bf16 %v402, %v401
        %v413 = vpack.c.bf16 %v404, %v403
        %v414 = vpack.c.bf16 %v406, %v405
        %v415 = vld [vmem:[%s2] sm:$0x1]
        %v417 = vlaneseq
        %v418 = vshrl.u32 %v417, 7
        %v419 = vsub.s32 0, %v418
        %v420 = vrot.slane %v415, %v419
        %422 = vmatprep.subr.bf16.mxu0 0
        %423 = vmatpush1.bf16.msra.mxu0 %v407
        %424 = vmatprep.subr.bf16.mxu0 0
        %425 = vmatpush1.bf16.msra.mxu0 %v408
        %426 = vmatprep.subr.bf16.mxu0 0
        %427 = vmatpush1.bf16.msra.mxu0 %v409
        %428 = vmatprep.subr.bf16.mxu0 0
        %429 = vmatpush1.bf16.msra.mxu0 %v410
        %430 = vmatprep.subr.bf16.mxu0 0
        %431 = vmatpush1.bf16.msra.mxu0 %v411
        %432 = vmatprep.subr.bf16.mxu0 0
        %433 = vmatpush1.bf16.msra.mxu0 %v412
        %434 = vmatprep.subr.bf16.mxu0 0
        %435 = vmatpush1.bf16.msra.mxu0 %v413
        %436 = vmatprep.subr.bf16.mxu0 0
        %437 = vmatpush1.bf16.msra.mxu0 %v414
        %438 = vmatprep.subr.bf16.mxu0 0
        %439 = vmatpush1.bf16.msra.mxu0 0
        %440 = vmatprep.subr.bf16.mxu0 0
        %441 = vmatpush1.bf16.msra.mxu0 0
        %442 = vmatprep.subr.bf16.mxu0 0
        %443 = vmatpush1.bf16.msra.mxu0 0
        %444 = vmatprep.subr.bf16.mxu0 0
        %445 = vmatpush1.bf16.msra.mxu0 0
        %446 = vmatprep.subr.bf16.mxu0 0
        %447 = vmatpush1.bf16.msra.mxu0 0
        %448 = vmatprep.subr.bf16.mxu0 0
        %449 = vmatpush1.bf16.msra.mxu0 0
        %450 = vmatprep.subr.bf16.mxu0 0
        %451 = vmatpush1.bf16.msra.mxu0 0
        %452 = vmatprep.subr.bf16.mxu0 0
        %453 = vmatpush1.bf16.msra.mxu0 0
        %454 = vmatprep.mubr.bf16.mxu0 0
        %455 = vmatmul.mubr.bf16.gmra.mrb[0].mxu0 %v390
        %v456 = vpop.f32.mrb[0].mxu0
        %v457 = vadd.f32 %v420, %v456
        %v458 = vpop.f32.mrb[0].mxu0
        %v459 = vpop.f32.mrb[0].mxu0
        %v460 = vpop.f32.mrb[0].mxu0
        %461 = vdwg.mxu0
        %v462 = vmax.f32 %v457, 0.0
        %v463 = vpack.c.bf16 %v462, %v462
        %v464 = vld [vmem:[#allocation4] sm:$0xff]
        %v465 = vld [vmem:[#allocation4 + $0x8] sm:$0xff]
        %v466 = vld [vmem:[#allocation4 + $0x10] sm:$0xff]
        %v467 = vld [vmem:[#allocation4 + $0x18] sm:$0xff]
        %v468 = vld [vmem:[#allocation4 + $0x20] sm:$0xff]
        %v469 = vld [vmem:[#allocation4 + $0x28] sm:$0xff]
        %v470 = vld [vmem:[#allocation4 + $0x30] sm:$0xff]
        %v471 = vld [vmem:[#allocation4 + $0x38] sm:$0xff]
        %v472 = vld [vmem:[#allocation4 + $0x40] sm:$0xff]
        %v473 = vld [vmem:[#allocation4 + $0x48] sm:$0xff]
        %v474 = vld [vmem:[#allocation4 + $0x50] sm:$0xff]
        %v475 = vld [vmem:[#allocation4 + $0x58] sm:$0xff]
        %v476 = vld [vmem:[#allocation4 + $0x60] sm:$0xff]
        %v477 = vld [vmem:[#allocation4 + $0x68] sm:$0xff]
        %v478 = vld [vmem:[#allocation4 + $0x70] sm:$0xff]
        %v479 = vld [vmem:[#allocation4 + $0x78] sm:$0xff]
        %v480 = vpack.c.bf16 %v465, %v464
        %v481 = vpack.c.bf16 %v467, %v466
        %v482 = vpack.c.bf16 %v469, %v468
        %v483 = vpack.c.bf16 %v471, %v470
        %v484 = vpack.c.bf16 %v473, %v472
        %v485 = vpack.c.bf16 %v475, %v474
        %v486 = vpack.c.bf16 %v477, %v476
        %v487 = vpack.c.bf16 %v479, %v478
        %v488 = vld [vmem:[%s4] sm:$0x1]
        %v490 = vlaneseq
        %v491 = vshrl.u32 %v490, 7
        %v492 = vsub.s32 0, %v491
        %v493 = vrot.slane %v488, %v492
        %495 = vmatprep.subr.bf16.mxu0 0
        %496 = vmatpush1.bf16.msra.mxu0 %v480
        %497 = vmatprep.subr.bf16.mxu0 0
        %498 = vmatpush1.bf16.msra.mxu0 %v481
        %499 = vmatprep.subr.bf16.mxu0 0
        %500 = vmatpush1.bf16.msra.mxu0 %v482
        %501 = vmatprep.subr.bf16.mxu0 0
        %502 = vmatpush1.bf16.msra.mxu0 %v483
        %503 = vmatprep.subr.bf16.mxu0 0
        %504 = vmatpush1.bf16.msra.mxu0 %v484
        %505 = vmatprep.subr.bf16.mxu0 0
        %506 = vmatpush1.bf16.msra.mxu0 %v485
        %507 = vmatprep.subr.bf16.mxu0 0
        %508 = vmatpush1.bf16.msra.mxu0 %v486
        %509 = vmatprep.subr.bf16.mxu0 0
        %510 = vmatpush1.bf16.msra.mxu0 %v487
        %511 = vmatprep.subr.bf16.mxu0 0
        %512 = vmatpush1.bf16.msra.mxu0 0
        %513 = vmatprep.subr.bf16.mxu0 0
        %514 = vmatpush1.bf16.msra.mxu0 0
        %515 = vmatprep.subr.bf16.mxu0 0
        %516 = vmatpush1.bf16.msra.mxu0 0
        %517 = vmatprep.subr.bf16.mxu0 0
        %518 = vmatpush1.bf16.msra.mxu0 0
        %519 = vmatprep.subr.bf16.mxu0 0
        %520 = vmatpush1.bf16.msra.mxu0 0
        %521 = vmatprep.subr.bf16.mxu0 0
        %522 = vmatpush1.bf16.msra.mxu0 0
        %523 = vmatprep.subr.bf16.mxu0 0
        %524 = vmatpush1.bf16.msra.mxu0 0
        %525 = vmatprep.subr.bf16.mxu0 0
        %526 = vmatpush1.bf16.msra.mxu0 0
        %527 = vmatprep.mubr.bf16.mxu0 0
        %528 = vmatmul.mubr.bf16.gmra.mrb[0].mxu0 %v463
        %v529 = vpop.f32.mrb[0].mxu0
        %v530 = vadd.f32 %v493, %v529
        %v531 = vpop.f32.mrb[0].mxu0
        %v532 = vpop.f32.mrb[0].mxu0
        %v533 = vpop.f32.mrb[0].mxu0
        %534 = vdwg.mxu0
        %535 = vrot.lane.b32.xlu0 %v530, 112
        %v536 = vpop.permute.xlu0 %535
        %v537 = vmul.f32 %v536, 1.442695
        %v538 = vpow.pop %v537
        %v539 = vunpack.c.l.bf16 %v390
        %v540 = vmul.f32 %v538, %v539
        %v541 = vadd.f32 %v530, %v540
        %v542 = vlaneseq
        %v543 = vand.u32 %v542, 127
        %vm544 = vcmp.lt.s32.totalorder %v543, 16
        %v545 = vsel %vm544, %v541, 0.0
        %v546 = vpack.c.bf16 %v545, %v545
        %v547 = vld [vmem:[#allocation6] sm:$0xff]
        %v548 = vld [vmem:[#allocation6 + $0x8] sm:$0xff]
        %v549 = vld [vmem:[#allocation6 + $0x10] sm:$0xff]
        %v550 = vld [vmem:[#allocation6 + $0x18] sm:$0xff]
        %v551 = vld [vmem:[#allocation6 + $0x20] sm:$0xff]
        %v552 = vld [vmem:[#allocation6 + $0x28] sm:$0xff]
        %v553 = vld [vmem:[#allocation6 + $0x30] sm:$0xff]
        %v554 = vld [vmem:[#allocation6 + $0x38] sm:$0xff]
        %v555 = vld [vmem:[#allocation6 + $0x40] sm:$0xff]
        %v556 = vld [vmem:[#allocation6 + $0x48] sm:$0xff]
        %v557 = vld [vmem:[#allocation6 + $0x50] sm:$0xff]
        %v558 = vld [vmem:[#allocation6 + $0x58] sm:$0xff]
        %v559 = vld [vmem:[#allocation6 + $0x60] sm:$0xff]
        %v560 = vld [vmem:[#allocation6 + $0x68] sm:$0xff]
        %v561 = vld [vmem:[#allocation6 + $0x70] sm:$0xff]
        %v562 = vld [vmem:[#allocation6 + $0x78] sm:$0xff]
        %v563 = vpack.c.bf16 %v548, %v547
        %v564 = vpack.c.bf16 %v550, %v549
        %v565 = vpack.c.bf16 %v552, %v551
        %v566 = vpack.c.bf16 %v554, %v553
        %v567 = vpack.c.bf16 %v556, %v555
        %v568 = vpack.c.bf16 %v558, %v557
        %v569 = vpack.c.bf16 %v560, %v559
        %v570 = vpack.c.bf16 %v562, %v561
        %v571 = vld [vmem:[%s6] sm:$0x1]
        %v573 = vlaneseq
        %v574 = vshrl.u32 %v573, 7
        %v575 = vsub.s32 0, %v574
        %v576 = vrot.slane %v571, %v575
        %578 = vmatprep.subr.bf16.mxu0 0
        %579 = vmatpush1.bf16.msra.mxu0 %v563
        %580 = vmatprep.subr.bf16.mxu0 0
        %581 = vmatpush1.bf16.msra.mxu0 %v564
        %582 = vmatprep.subr.bf16.mxu0 0
        %583 = vmatpush1.bf16.msra.mxu0 %v565
        %584 = vmatprep.subr.bf16.mxu0 0
        %585 = vmatpush1.bf16.msra.mxu0 %v566
        %586 = vmatprep.subr.bf16.mxu0 0
        %587 = vmatpush1.bf16.msra.mxu0 %v567
        %588 = vmatprep.subr.bf16.mxu0 0
        %589 = vmatpush1.bf16.msra.mxu0 %v568
        %590 = vmatprep.subr.bf16.mxu0 0
        %591 = vmatpush1.bf16.msra.mxu0 %v569
        %592 = vmatprep.subr.bf16.mxu0 0
        %593 = vmatpush1.bf16.msra.mxu0 %v570
        %594 = vmatprep.subr.bf16.mxu0 0
        %595 = vmatpush1.bf16.msra.mxu0 0
        %596 = vmatprep.subr.bf16.mxu0 0
        %597 = vmatpush1.bf16.msra.mxu0 0
        %598 = vmatprep.subr.bf16.mxu0 0
        %599 = vmatpush1.bf16.msra.mxu0 0
        %600 = vmatprep.subr.bf16.mxu0 0
        %601 = vmatpush1.bf16.msra.mxu0 0
        %602 = vmatprep.subr.bf16.mxu0 0
        %603 = vmatpush1.bf16.msra.mxu0 0
        %604 = vmatprep.subr.bf16.mxu0 0
        %605 = vmatpush1.bf16.msra.mxu0 0
        %606 = vmatprep.subr.bf16.mxu0 0
        %607 = vmatpush1.bf16.msra.mxu0 0
        %608 = vmatprep.subr.bf16.mxu0 0
        %609 = vmatpush1.bf16.msra.mxu0 0
        %610 = vmatprep.mubr.bf16.mxu0 0
        %611 = vmatmul.mubr.bf16.gmra.mrb[0].mxu0 %v546
        %v612 = vpop.f32.mrb[0].mxu0
        %v613 = vadd.f32 %v576, %v612
        %v614 = vpop.f32.mrb[0].mxu0
        %v615 = vpop.f32.mrb[0].mxu0
        %v616 = vpop.f32.mrb[0].mxu0
        %617 = vdwg.mxu0
        %v618 = vmax.f32 %v613, 0.0
        %v619 = vpack.c.bf16 %v618, %v618
        %v620 = vld [vmem:[#allocation7] sm:$0xff]
        %v621 = vld [vmem:[#allocation7 + $0x8] sm:$0xff]
        %v622 = vld [vmem:[#allocation7 + $0x10] sm:$0xff]
        %v623 = vld [vmem:[#allocation7 + $0x18] sm:$0xff]
        %v624 = vld [vmem:[#allocation7 + $0x20] sm:$0xff]
        %v625 = vld [vmem:[#allocation7 + $0x28] sm:$0xff]
        %v626 = vld [vmem:[#allocation7 + $0x30] sm:$0xff]
        %v627 = vld [vmem:[#allocation7 + $0x38] sm:$0xff]
        %v628 = vld [vmem:[#allocation7 + $0x40] sm:$0xff]
        %v629 = vld [vmem:[#allocation7 + $0x48] sm:$0xff]
        %v630 = vld [vmem:[#allocation7 + $0x50] sm:$0xff]
        %v631 = vld [vmem:[#allocation7 + $0x58] sm:$0xff]
        %v632 = vld [vmem:[#allocation7 + $0x60] sm:$0xff]
        %v633 = vld [vmem:[#allocation7 + $0x68] sm:$0xff]
        %v634 = vld [vmem:[#allocation7 + $0x70] sm:$0xff]
        %v635 = vld [vmem:[#allocation7 + $0x78] sm:$0xff]
        %v636 = vpack.c.bf16 %v621, %v620
        %v637 = vpack.c.bf16 %v623, %v622
        %v638 = vpack.c.bf16 %v625, %v624
        %v639 = vpack.c.bf16 %v627, %v626
        %v640 = vpack.c.bf16 %v629, %v628
        %v641 = vpack.c.bf16 %v631, %v630
        %v642 = vpack.c.bf16 %v633, %v632
        %v643 = vpack.c.bf16 %v635, %v634
        %v644 = vld [vmem:[%s8] sm:$0x1]
        %v646 = vlaneseq
        %v647 = vshrl.u32 %v646, 7
        %v648 = vsub.s32 0, %v647
        %v649 = vrot.slane %v644, %v648
        %651 = vmatprep.subr.bf16.mxu0 0
        %652 = vmatpush1.bf16.msra.mxu0 %v636
        %653 = vmatprep.subr.bf16.mxu0 0
        %654 = vmatpush1.bf16.msra.mxu0 %v637
        %655 = vmatprep.subr.bf16.mxu0 0
        %656 = vmatpush1.bf16.msra.mxu0 %v638
        %657 = vmatprep.subr.bf16.mxu0 0
        %658 = vmatpush1.bf16.msra.mxu0 %v639
        %659 = vmatprep.subr.bf16.mxu0 0
        %660 = vmatpush1.bf16.msra.mxu0 %v640
        %661 = vmatprep.subr.bf16.mxu0 0
        %662 = vmatpush1.bf16.msra.mxu0 %v641
        %663 = vmatprep.subr.bf16.mxu0 0
        %664 = vmatpush1.bf16.msra.mxu0 %v642
        %665 = vmatprep.subr.bf16.mxu0 0
        %666 = vmatpush1.bf16.msra.mxu0 %v643
        %667 = vmatprep.subr.bf16.mxu0 0
        %668 = vmatpush1.bf16.msra.mxu0 0
        %669 = vmatprep.subr.bf16.mxu0 0
        %670 = vmatpush1.bf16.msra.mxu0 0
        %671 = vmatprep.subr.bf16.mxu0 0
        %672 = vmatpush1.bf16.msra.mxu0 0
        %673 = vmatprep.subr.bf16.mxu0 0
        %674 = vmatpush1.bf16.msra.mxu0 0
        %675 = vmatprep.subr.bf16.mxu0 0
        %676 = vmatpush1.bf16.msra.mxu0 0
        %677 = vmatprep.subr.bf16.mxu0 0
        %678 = vmatpush1.bf16.msra.mxu0 0
        %679 = vmatprep.subr.bf16.mxu0 0
        %680 = vmatpush1.bf16.msra.mxu0 0
        %681 = vmatprep.subr.bf16.mxu0 0
        %682 = vmatpush1.bf16.msra.mxu0 0
        %683 = vmatprep.mubr.bf16.mxu0 0
        %684 = vmatmul.mubr.bf16.gmra.mrb[0].mxu0 %v619
        %v685 = vpop.f32.mrb[0].mxu0
        %v686 = vadd.f32 %v649, %v685
        %v687 = vpop.f32.mrb[0].mxu0
        %v688 = vpop.f32.mrb[0].mxu0
        %v689 = vpop.f32.mrb[0].mxu0
        %690 = vdwg.mxu0
        %691 = vst [vmem:[%s388] sm:$0xff] %v530
        %692 = vst [vmem:[%s388 + $0x8] sm:$0xff] %v686
        %p693 = scmp.lt.s32.totalorder %s23, 1
        %s694 = scalar_select %p693, %s23, 1
        %s695 = smul.addr %s694, 2
        %s696 = smul.addr %s695, 8
        %s697 = scalar_lea.vmem %s9, %s696
        // Predicated region
        $region73: #{cvae_forward.1} parent=55 // pred_check
          %p698 = pneg %p235
        $region74: #{cvae_forward.1} parent=55 // pred_check_branch
          %700 = sbr.rel (%p698) target = $region76
        $region75: #{cvae_forward.1} parent=55 // pred_region
          _
        $region76: #{cvae_forward.1} parent=55 // pred_fallthru
          _
      $region56: #{cvae_forward.1} parent=5 // pred_fallthru
        _
      %p701 = scmp.le.s32.totalorder 2, %s18
      // Predicated region
      $region77: #{cvae_forward.1} parent=5 // pred_check
        %p702 = pneg %p701
      $region78: #{cvae_forward.1} parent=5 // pred_check_branch
        %704 = sbr.rel (%p702) target = $region80
      $region79: #{cvae_forward.1} parent=5 // pred_region
        %s705 = ssub.s32 %s18, 2
        // Predicated region
        $region81: #{cvae_forward.1} parent=79 // pred_check
          %p706 = pneg %p241
        $region82: #{cvae_forward.1} parent=79 // pred_check_branch
          %708 = sbr.rel (%p706) target = $region84
        $region83: #{cvae_forward.1} parent=79 // pred_region
          %p709 = scmp.lt.s32.totalorder %s24, 1
          %s710 = scalar_select %p709, %s24, 1
          %s711 = smul.addr %s710, 2
          %s712 = smul.addr %s711, 8
          %s713 = scalar_lea.vmem %s9, %s712
        $region84: #{cvae_forward.1} parent=79 // pred_fallthru
          _
      $region80: #{cvae_forward.1} parent=5 // pred_fallthru
        _
    $region6: #{cvae_forward.1} parent=1 // loop_footer
      %s22 = sadd.s32 1, %s18
    $region7: #{cvae_forward.1} parent=1 // loop_footer_branch
      %17 = sbr.rel target = $region3
    $region8: #{cvae_forward.1} parent=1 // loop_exit
      _
    %714 = vsyncpa [#allocation3], 1
    %s715 = scalar_lea.sflag [#allocation3], 1
    %716 = vsyncpa %s715, 1
    %717 = vsyncpa [#allocation5], 1
    %718 = vsyncpa [#allocation8], 1

</llo_original>
